<compile_context>
chip_gen: v7x
topology: tpu7x:2x2x1
jax: 0.10.0
libtpu: 0.0.40
codegen_flags: <defaults>
</compile_context>

<pallas_src>
import jax
import jax.numpy as jnp
from jax.experimental import pallas as pl
from jax.experimental.pallas import tpu as pltpu


_LANE_W = 512                    # lane-dense last dim: 4 * 128 lanes (long DMAs)
_TARGET_BLOCK_BYTES = 2 << 20    # ~2 MiB per operand block (4x with dbl-buffered I/O)
_SMALL_INPUT_BYTES = 256 << 10   # below this, a fused XLA multiply beats kernel launch


def _square_kernel(x_ref, o_ref):
    x = x_ref[...]
    o_ref[...] = x * x


def _square_2d(x2d: jax.Array, donate: bool) -> jax.Array:
    """Square a (rows, _LANE_W) slab with a 1-D row-tiled Pallas kernel."""
    rows, _ = x2d.shape
    itemsize = jnp.dtype(x2d.dtype).itemsize
    # ~2 MiB blocks: f32 -> 1024 rows, bf16 -> 2048, int8 -> 4096.  tr is a
    # power-of-two multiple of 8/16/32, so partial last grid blocks (masked by
    # Pallas) stay sublane-aligned for every supported dtype packing.
    tr = max(8, _TARGET_BLOCK_BYTES // (_LANE_W * itemsize))
    tr = min(tr, rows)           # full-extent block is always legal
    grid = (pl.cdiv(rows, tr),)

    return pl.pallas_call(
        _square_kernel,
        out_shape=jax.ShapeDtypeStruct((rows, _LANE_W), x2d.dtype),
        grid_spec=pl.GridSpec(
            grid=grid,
            in_specs=[pl.BlockSpec((tr, _LANE_W), lambda i: (i, 0))],
            out_specs=pl.BlockSpec((tr, _LANE_W), lambda i: (i, 0)),
        ),
        compiler_params=pltpu.CompilerParams(
            # TODO(synk): on v7x, use (pltpu.CORE_PARALLEL,) and consider
            # pipeline_mode=pl.Buffered(3) on in/out specs if DMA is exposed.
            dimension_semantics=("parallel",),
        ),
        input_output_aliases=({0: 0} if donate else {}),
    )(x2d)


def mynet_forward(x: jax.Array, *, donate: bool = False,
                  min_pallas_bytes: int = _SMALL_INPUT_BYTES) -> jax.Array:
    """Pallas equivalent of MyNet.forward: returns x ** 2 elementwise."""
    orig_shape = x.shape
    n = x.size
    nbytes = n * jnp.dtype(x.dtype).itemsize
    rows = n // _LANE_W

    # Small / sub-row inputs: launch + per-step overhead dwarfs the VPU work.
    if n == 0 or rows == 0 or nbytes < min_pallas_bytes:
        return x * x

    flat = x.reshape(-1)
    body_n = rows * _LANE_W
    tail = n - body_n

    if tail == 0:
        # Fully aligned: zero extra HBM passes (reshape of a contiguous array).
        out2d = _square_2d(flat.reshape(rows, _LANE_W), donate)
        return out2d.reshape(orig_shape)

    # Unaligned: kernel on the aligned prefix, tiny (<512 elem) tail in jnp.
    # No full-size pad/slice passes; only the small tail goes through XLA.
    head = flat[:body_n]
    tail_vals = flat[body_n:]
    out_body = _square_2d(head.reshape(rows, _LANE_W), donate=False)
    out_tail = tail_vals * tail_vals
    out_flat = jnp.concatenate([out_body.reshape(-1), out_tail])
    return out_flat.reshape(orig_shape)


if __name__ == "__main__":
    # MyNet has no parameters; deterministic NCHW input (B=2, C=4, H=W=16).
    key = jax.random.PRNGKey(0)
    x = jax.random.normal(key, (2, 4, 16, 16), dtype=jnp.float32)

    # Force the Pallas path (the default dispatch would use plain XLA for an
    # input this small) to verify the kernel itself.
    y = jax.block_until_ready(mynet_forward(x, min_pallas_bytes=0))
    assert y.shape == x.shape and y.dtype == x.dtype
    assert jnp.allclose(y, x * x, atol=1e-6, rtol=1e-6)

    # Also exercise the unaligned-tail path once (aligned prefix + jnp tail).
    x2 = jax.random.normal(jax.random.PRNGKey(1), (3, 5, 17, 13), dtype=jnp.float32)
    y2 = jax.block_until_ready(mynet_forward(x2, min_pallas_bytes=0))
    assert y2.shape == x2.shape and y2.dtype == x2.dtype
    assert jnp.allclose(y2, x2 * x2, atol=1e-6, rtol=1e-6)

    print("KERNEL_OK")
</pallas_src>

<mosaic_0001>
module attributes {stable_mosaic.version = 11 : i64} {
  func.func @_square_kernel(%arg0: i32, %arg1: memref<4x512xf32, #tpu.memory_space<vmem>>, %arg2: memref<4x512xf32, #tpu.memory_space<vmem>>) attributes {dimension_semantics = [#tpu.dimension_semantics<parallel>], iteration_bounds = array<i64: 1>, scalar_prefetch = 0 : i64, scratch_operands = 0 : i64, tpu.core_type = #tpu.core_type<tc>, window_params = [{transform_indices = @transform_0, window_bounds = array<i64: 4, 512>}, {transform_indices = @transform_1, window_bounds = array<i64: 4, 512>}]} {
    %c0 = arith.constant 0 : index
    %c0_0 = arith.constant 0 : index
    %0 = vector.load %arg1[%c0, %c0_0] : memref<4x512xf32, #tpu.memory_space<vmem>>, vector<4x512xf32>
    %1 = arith.mulf %0, %0 : vector<4x512xf32>
    %c0_1 = arith.constant 0 : index
    %c0_2 = arith.constant 0 : index
    %2 = vector.load %arg2[%c0_1, %c0_2] : memref<4x512xf32, #tpu.memory_space<vmem>>, vector<4x512xf32>
    tpu.vector_store %arg2[%c0_1, %c0_2], %1 {strides = array<i32>} : memref<4x512xf32, #tpu.memory_space<vmem>>, vector<4x512xf32>,
    return
  }
  func.func @transform_0(%arg0: i32) -> (i32, i32) {
    %c0_i32 = arith.constant 0 : i32
    %c0_i32_0 = arith.constant 0 : i32
    return %arg0, %c0_i32 : i32, i32
  }
  func.func @transform_1(%arg0: i32) -> (i32, i32) {
    %c0_i32 = arith.constant 0 : i32
    %c0_i32_0 = arith.constant 0 : i32
    return %arg0, %c0_i32 : i32, i32
  }
}

</mosaic_0001>

<llo_original>
// kernel: tpu_custom_call.1
$region0: #{tpu_custom_call.1}
  #allocation0 [shape = 'u32[]', space=smem, size = 0x4, offset = 0x4, fixed_abs, tag = 'smem constant byte address 0x4 - core index']
  #allocation1 [shape = 'u32[144,128]{1,0:T(1,128)}', space=vmem, size = 0x12000, scoped, tag = 'internal scratch']
  %s0 = inlined_call_operand.hbm [shape: f32[4,512], index: 0, kind: input, shape index: {}]
  %s1 = inlined_call_operand.hbm [shape: f32[4,512], index: 1, kind: output, shape index: {}]
  %s2 = sld [smem:[#allocation0]]
  $region18: #{tpu_custom_call.1} parent=0
    _
  %s4 = ssub.s32 1, %s2
  %s5 = scalar_select 0, %s4, %s2
  $region1: #{tpu_custom_call.1} parent=0
    #allocation2 [shape = 'u8[8192]{0}', space=vmem, size = 0x2000, scoped, tag = 'input window, operand 0, single buffered']
    #allocation3 [shape = 's32[1]{0}', space=sflag, size = 0x4, scoped, tag = 'scoped memory for tpu_custom_call.1']
    #allocation4 [shape = 's32[1]{0}', space=sflag, size = 0x4, scoped, tag = 'scoped memory for tpu_custom_call.1']
    #allocation5 [shape = 'u8[8192]{0}', space=vmem, size = 0x2000, scoped, tag = 'output window, operand 0, single buffered']
    %6 = vsyncpa [#allocation3], 0
    %7 = vsyncpa [#allocation4], 0
    // Predicated region
    $region2: #{tpu_custom_call.1} parent=1 // pred_check
      _
    $region3: #{tpu_custom_call.1} parent=1 // pred_check_branch
      %9 = sbr.rel (0) target = $region5
    $region4: #{tpu_custom_call.1} parent=1 // pred_region
      %s11 = ssub.s32 256, 256
      %12 = vsyncadd [#allocation3], %s11
      %s14 = sshll.u32 [#allocation2], 4
      %s15 = int_to_ptr.vmem [resolvable:$true] %s14
      %17 = dma.hbm_to_vmem [thread:$0]  %s0, 256, %s15, [#allocation3]
    $region5: #{tpu_custom_call.1} parent=1 // pred_fallthru
      _
    // Predicated region
    $region6: #{tpu_custom_call.1} parent=1 // pred_check
      _
    $region7: #{tpu_custom_call.1} parent=1 // pred_check_branch
      %19 = sbr.rel (0) target = $region9
    $region8: #{tpu_custom_call.1} parent=1 // pred_region
      %20 = dma.done [#allocation3], 256
    $region9: #{tpu_custom_call.1} parent=1 // pred_fallthru
      _
    %v21 = vld [vmem:[#allocation2] sm:$0xff]
    %v22 = vld [vmem:[#allocation2 + $0x8] sm:$0xff]
    %v23 = vmul.f32 %v21, %v21
    %v24 = vmul.f32 %v22, %v22
    %25 = vst [vmem:[#allocation5] sm:$0xff] %v23
    %26 = vst [vmem:[#allocation5 + $0x8] sm:$0xff] %v24
    // Predicated region
    $region10: #{tpu_custom_call.1} parent=1 // pred_check
      _
    $region11: #{tpu_custom_call.1} parent=1 // pred_check_branch
      %28 = sbr.rel (0) target = $region13
    $region12: #{tpu_custom_call.1} parent=1 // pred_region
      %s30 = ssub.s32 256, 256
      %31 = vsyncadd [#allocation4], %s30
      %s33 = sshll.u32 [#allocation5], 4
      %s34 = int_to_ptr.vmem [resolvable:$true] %s33
      %36 = dma.vmem_to_hbm [thread:$0]  %s34, 256, %s1, [#allocation4]
    $region13: #{tpu_custom_call.1} parent=1 // pred_fallthru
      _
    // Predicated region
    $region14: #{tpu_custom_call.1} parent=1 // pred_check
      _
    $region15: #{tpu_custom_call.1} parent=1 // pred_check_branch
      %38 = sbr.rel (0) target = $region17
    $region16: #{tpu_custom_call.1} parent=1 // pred_region
      %39 = dma.done [#allocation4], 256
    $region17: #{tpu_custom_call.1} parent=1 // pred_fallthru
      _
    %40 = vsyncpa [#allocation3], 1
    %41 = vsyncpa [#allocation4], 1

</llo_original>
